<compile_context>
chip_gen: v6e
topology: v6e:2x2x1
jax: 0.10.0
libtpu: 0.0.40
codegen_flags: <defaults>
</compile_context>

<pallas_src>
import jax
import jax.numpy as jnp
from jax import lax
from jax.experimental import pallas as pl
from jax.experimental.pallas import tpu as pltpu


_TB = 8  # graphs per grid step (sublane-aligned)


def _qgnn_kernel(ang_ref, wt_ref, b_ref, out_ref):
    """Fused quantum-probability + linear layer for one batch tile.

    ang_ref: (TB, n)      RY angles, one graph per sublane row
    wt_ref : (n, LANES)   fc weight transposed, zero-padded on lanes
    b_ref  : (1, LANES)   fc bias, zero-padded on lanes
    out    : (TB, LANES)  logits (lane-padded, sliced in the wrapper)
    """
    ang = ang_ref[...]
    tb, n = ang.shape

    # reduced[b, k] = |<k| CX_chain . RY(x_b) |0...0>|^2 for k = 0..n-1.
    # CX(i, i+1) chain: output bit_i = XOR of input bits 0..i, so the
    # pre-image bit of qubit i is a_i = k_i XOR k_{i-1} (a_0 = k_0).
    # RZ is diagonal, so the probabilities are independent of the frozen
    # RZ weights (the phase cancels in |.|^2).
    kk = lax.broadcasted_iota(jnp.int32, (tb, n), 1)   # basis index k on lanes
    psi = jnp.ones((tb, n), jnp.float32)
    prev = jnp.zeros((tb, n), jnp.int32)
    for i in range(n):                                  # static, n = 8
        ang_i = ang[:, i:i + 1]                         # (TB, 1)
        c_i = jnp.cos(ang_i * 0.5)                      # EUP
        s_i = jnp.sin(ang_i * 0.5)
        bit = (kk >> i) & 1
        a = jnp.bitwise_xor(bit, prev)
        psi = psi * jnp.where(a == 1, s_i, c_i)
        prev = bit
    reduced = psi * psi                                 # (TB, n) probabilities

    # logits = reduced @ W^T + bias.  K = 8, so a VPU broadcast-multiply
    # accumulation over 8 rows beats an M=8/K=8 MXU push.
    acc = reduced[:, 0:1] * wt_ref[0:1, :]
    for k in range(1, n):
        acc = acc + reduced[:, k:k + 1] * wt_ref[k:k + 1, :]
    out_ref[...] = acc + b_ref[...]


def pack_fc(fc_weight, fc_bias):
    """One-time packing of the FROZEN nn.Linear params into lane-dense slabs.

    fc_weight: (n*n, n)  -> wt_packed (n, LANES)   (W^T, zero lane-padded)
    fc_bias:   (n*n,)    -> bias_packed (1, LANES)
    """
    out_dim, n = fc_weight.shape
    lanes = pl.cdiv(out_dim, 128) * 128
    wt = jnp.zeros((n, lanes), jnp.float32)
    wt = wt.at[:, :out_dim].set(fc_weight.T.astype(jnp.float32))
    b = jnp.zeros((1, lanes), jnp.float32)
    b = b.at[0, :out_dim].set(fc_bias.astype(jnp.float32))
    return wt, b


@jax.jit
def qgnn_forward(x_batch, wt_packed, bias_packed):
    """Batched forward pass of QGNNTransferModel.

    x_batch:     (B, num_nodes, F) or (B, num_nodes) node features; per graph
                 the flattened first n entries are the RY angles (matches
                 `data.x.view(-1)` in the reference).
    wt_packed:   (n, LANES) from pack_fc (frozen fc weight, transposed).
    bias_packed: (1, LANES) from pack_fc (frozen fc bias).
    returns:     (B, n*n) logits, float32.

    The frozen RZ weights are not inputs: they only add a phase, which the
    |statevector|^2 measurement cancels (see module-level note).
    """
    n, lanes = wt_packed.shape
    out_dim = n * n
    B = x_batch.shape[0]
    ang = x_batch.reshape(B, -1)[:, :n].astype(jnp.float32)

    b_pad = pl.cdiv(B, _TB) * _TB
    ang = jnp.pad(ang, ((0, b_pad - B), (0, 0)))

    out = pl.pallas_call(
        _qgnn_kernel,
        out_shape=jax.ShapeDtypeStruct((b_pad, lanes), jnp.float32),
        grid=(b_pad // _TB,),
        in_specs=[
            pl.BlockSpec((_TB, n), lambda b: (b, 0)),     # RY angles tile
            pl.BlockSpec((n, lanes), lambda b: (0, 0)),   # W^T slab (resident)
            pl.BlockSpec((1, lanes), lambda b: (0, 0)),   # bias row (resident)
        ],
        out_specs=pl.BlockSpec((_TB, lanes), lambda b: (b, 0)),
        compiler_params=pltpu.CompilerParams(
            dimension_semantics=("parallel",)),           # 2nd TC on v7x
    )(ang, wt_packed, bias_packed)
    return out[:B, :out_dim]


def _reference(x, rz, W, b):
    """Pure-JAX full-statevector reference for ONE graph (checks everything).

    # TODO(synk): Qiskit transpile/AerSimulator.run has no Pallas equivalent;
    # the statevector probabilities are reproduced analytically (here and
    # in-kernel).  Assumes Qiskit little-endian ordering: bit i of the basis
    # index corresponds to qubit i.
    """
    n = rz.shape[0]
    D = 1 << n
    xf = x.reshape(-1)[:n].astype(jnp.float32)
    c = jnp.cos(xf / 2.0)
    s = jnp.sin(xf / 2.0)
    idx = jnp.arange(D)
    bits = (idx[:, None] >> jnp.arange(n)[None, :]) & 1
    amp = jnp.where(bits == 1, s[None, :], c[None, :])
    psi_ry = jnp.prod(amp, axis=1)
    a_bits = jnp.concatenate([bits[:, :1], bits[:, 1:] ^ bits[:, :-1]], axis=1)
    src = jnp.sum(a_bits * (1 << jnp.arange(n))[None, :], axis=1)
    psi_cx = psi_ry[src]
    phase = jnp.sum(
        jnp.where(bits == 1, rz[None, :], -rz[None, :]) / 2.0, axis=1)
    probs = (psi_cx * jnp.cos(phase)) ** 2 + (psi_cx * jnp.sin(phase)) ** 2
    reduced = probs[:n].astype(jnp.float32)
    return reduced @ W.T.astype(jnp.float32) + b.astype(jnp.float32)


if __name__ == "__main__":
    num_nodes = 8   # n_qubits; fc: 8 -> 64
    batch = 2       # two graphs

    key = jax.random.PRNGKey(0)
    k_x, k_rz, k_w, k_b = jax.random.split(key, 4)

    # data.x per graph: node feature matrix (num_nodes, 1); forward flattens it.
    x = jax.random.normal(k_x, (batch, num_nodes, 1), dtype=jnp.float32)

    # pretrained_rz ~ randn(n_qubits): frozen, phase-only -> no effect on probs.
    pretrained_rz = jax.random.normal(k_rz, (num_nodes,), dtype=jnp.float32)

    # fc = nn.Linear(num_nodes, num_nodes**2): weight (n*n, n), bias (n*n).
    bound = 1.0 / jnp.sqrt(jnp.float32(num_nodes))
    fc_weight = jax.random.uniform(
        k_w, (num_nodes * num_nodes, num_nodes),
        minval=-bound, maxval=bound, dtype=jnp.float32)
    fc_bias = jax.random.uniform(
        k_b, (num_nodes * num_nodes,),
        minval=-bound, maxval=bound, dtype=jnp.float32)

    # One-time packing of the frozen fc params (hoisted out of the forward).
    wt_packed, bias_packed = pack_fc(fc_weight, fc_bias)

    logits = qgnn_forward(x, wt_packed, bias_packed)
    jax.block_until_ready(logits)

    assert logits.shape == (batch, num_nodes * num_nodes)
    assert logits.dtype == jnp.float32

    ref = jnp.stack([_reference(x[i], pretrained_rz, fc_weight, fc_bias)
                     for i in range(batch)])
    assert jnp.allclose(logits, ref, atol=1e-5, rtol=1e-5), (
        f"max abs err {jnp.max(jnp.abs(logits - ref))}")

    print("KERNEL_OK")
</pallas_src>

<mosaic_0001>
module attributes {stable_mosaic.version = 11 : i64} {
  func.func @_qgnn_kernel(%arg0: i32, %arg1: memref<8x8xf32, #tpu.memory_space<vmem>>, %arg2: memref<8x128xf32, #tpu.memory_space<vmem>>, %arg3: memref<1x128xf32, #tpu.memory_space<vmem>>, %arg4: memref<8x128xf32, #tpu.memory_space<vmem>>) attributes {dimension_semantics = [#tpu.dimension_semantics<parallel>], iteration_bounds = array<i64: 1>, scalar_prefetch = 0 : i64, scratch_operands = 0 : i64, tpu.core_type = #tpu.core_type<tc>, window_params = [{transform_indices = @transform_0, window_bounds = array<i64: 8, 8>}, {pipeline_mode = #tpu.pipeline_mode<synchronous>, transform_indices = @transform_1, window_bounds = array<i64: 8, 128>}, {pipeline_mode = #tpu.pipeline_mode<synchronous>, transform_indices = @transform_2, window_bounds = array<i64: 1, 128>}, {transform_indices = @transform_3, window_bounds = array<i64: 8, 128>}]} {
    %c0 = arith.constant 0 : index
    %c0_0 = arith.constant 0 : index
    %0 = vector.load %arg1[%c0, %c0_0] : memref<8x8xf32, #tpu.memory_space<vmem>>, vector<8x8xf32>
    %1 = tpu.iota {dimensions = array<i32: 1>} : vector<8x8xi32>
    %cst = arith.constant 1.000000e+00 : f32
    %2 = vector.broadcast %cst : f32 to vector<8x8xf32>
    %c0_i32 = arith.constant 0 : i32
    %3 = vector.broadcast %c0_i32 : i32 to vector<8x8xi32>
    %4 = vector.extract_strided_slice %0 {offsets = [0, 0], sizes = [8, 1], strides = [1, 1]} : vector<8x8xf32> to vector<8x1xf32>
    %cst_1 = arith.constant 5.000000e-01 : f32
    %5 = vector.broadcast %cst_1 : f32 to vector<8x1xf32>
    %6 = arith.mulf %4, %5 : vector<8x1xf32>
    %7 = math.cos %6 : vector<8x1xf32>
    %cst_2 = arith.constant 5.000000e-01 : f32
    %8 = vector.broadcast %cst_2 : f32 to vector<8x1xf32>
    %9 = arith.mulf %4, %8 : vector<8x1xf32>
    %10 = math.sin %9 : vector<8x1xf32>
    %c0_i32_3 = arith.constant 0 : i32
    %11 = vector.broadcast %c0_i32_3 : i32 to vector<8x8xi32>
    %12 = arith.shrsi %1, %11 : vector<8x8xi32>
    %c1_i32 = arith.constant 1 : i32
    %13 = vector.broadcast %c1_i32 : i32 to vector<8x8xi32>
    %14 = arith.andi %12, %13 : vector<8x8xi32>
    %15 = arith.xori %14, %3 : vector<8x8xi32>
    %c1_i32_4 = arith.constant 1 : i32
    %16 = vector.broadcast %c1_i32_4 : i32 to vector<8x8xi32>
    %17 = arith.cmpi eq, %15, %16 : vector<8x8xi32>
    %18 = vector.shape_cast %10 : vector<8x1xf32> to vector<8x1xf32>
    %19 = vector.broadcast %18 : vector<8x1xf32> to vector<8x8xf32>
    %20 = vector.shape_cast %7 : vector<8x1xf32> to vector<8x1xf32>
    %21 = vector.broadcast %20 : vector<8x1xf32> to vector<8x8xf32>
    %22 = arith.select %17, %19, %21 : vector<8x8xi1>, vector<8x8xf32>
    %23 = arith.mulf %2, %22 : vector<8x8xf32>
    %24 = vector.extract_strided_slice %0 {offsets = [0, 1], sizes = [8, 1], strides = [1, 1]} : vector<8x8xf32> to vector<8x1xf32>
    %cst_5 = arith.constant 5.000000e-01 : f32
    %25 = vector.broadcast %cst_5 : f32 to vector<8x1xf32>
    %26 = arith.mulf %24, %25 : vector<8x1xf32>
    %27 = math.cos %26 : vector<8x1xf32>
    %cst_6 = arith.constant 5.000000e-01 : f32
    %28 = vector.broadcast %cst_6 : f32 to vector<8x1xf32>
    %29 = arith.mulf %24, %28 : vector<8x1xf32>
    %30 = math.sin %29 : vector<8x1xf32>
    %c1_i32_7 = arith.constant 1 : i32
    %31 = vector.broadcast %c1_i32_7 : i32 to vector<8x8xi32>
    %32 = arith.shrsi %1, %31 : vector<8x8xi32>
    %c1_i32_8 = arith.constant 1 : i32
    %33 = vector.broadcast %c1_i32_8 : i32 to vector<8x8xi32>
    %34 = arith.andi %32, %33 : vector<8x8xi32>
    %35 = arith.xori %34, %14 : vector<8x8xi32>
    %c1_i32_9 = arith.constant 1 : i32
    %36 = vector.broadcast %c1_i32_9 : i32 to vector<8x8xi32>
    %37 = arith.cmpi eq, %35, %36 : vector<8x8xi32>
    %38 = vector.shape_cast %30 : vector<8x1xf32> to vector<8x1xf32>
    %39 = vector.broadcast %38 : vector<8x1xf32> to vector<8x8xf32>
    %40 = vector.shape_cast %27 : vector<8x1xf32> to vector<8x1xf32>
    %41 = vector.broadcast %40 : vector<8x1xf32> to vector<8x8xf32>
    %42 = arith.select %37, %39, %41 : vector<8x8xi1>, vector<8x8xf32>
    %43 = arith.mulf %23, %42 : vector<8x8xf32>
    %44 = vector.extract_strided_slice %0 {offsets = [0, 2], sizes = [8, 1], strides = [1, 1]} : vector<8x8xf32> to vector<8x1xf32>
    %cst_10 = arith.constant 5.000000e-01 : f32
    %45 = vector.broadcast %cst_10 : f32 to vector<8x1xf32>
    %46 = arith.mulf %44, %45 : vector<8x1xf32>
    %47 = math.cos %46 : vector<8x1xf32>
    %cst_11 = arith.constant 5.000000e-01 : f32
    %48 = vector.broadcast %cst_11 : f32 to vector<8x1xf32>
    %49 = arith.mulf %44, %48 : vector<8x1xf32>
    %50 = math.sin %49 : vector<8x1xf32>
    %c2_i32 = arith.constant 2 : i32
    %51 = vector.broadcast %c2_i32 : i32 to vector<8x8xi32>
    %52 = arith.shrsi %1, %51 : vector<8x8xi32>
    %c1_i32_12 = arith.constant 1 : i32
    %53 = vector.broadcast %c1_i32_12 : i32 to vector<8x8xi32>
    %54 = arith.andi %52, %53 : vector<8x8xi32>
    %55 = arith.xori %54, %34 : vector<8x8xi32>
    %c1_i32_13 = arith.constant 1 : i32
    %56 = vector.broadcast %c1_i32_13 : i32 to vector<8x8xi32>
    %57 = arith.cmpi eq, %55, %56 : vector<8x8xi32>
    %58 = vector.shape_cast %50 : vector<8x1xf32> to vector<8x1xf32>
    %59 = vector.broadcast %58 : vector<8x1xf32> to vector<8x8xf32>
    %60 = vector.shape_cast %47 : vector<8x1xf32> to vector<8x1xf32>
    %61 = vector.broadcast %60 : vector<8x1xf32> to vector<8x8xf32>
    %62 = arith.select %57, %59, %61 : vector<8x8xi1>, vector<8x8xf32>
    %63 = arith.mulf %43, %62 : vector<8x8xf32>
    %64 = vector.extract_strided_slice %0 {offsets = [0, 3], sizes = [8, 1], strides = [1, 1]} : vector<8x8xf32> to vector<8x1xf32>
    %cst_14 = arith.constant 5.000000e-01 : f32
    %65 = vector.broadcast %cst_14 : f32 to vector<8x1xf32>
    %66 = arith.mulf %64, %65 : vector<8x1xf32>
    %67 = math.cos %66 : vector<8x1xf32>
    %cst_15 = arith.constant 5.000000e-01 : f32
    %68 = vector.broadcast %cst_15 : f32 to vector<8x1xf32>
    %69 = arith.mulf %64, %68 : vector<8x1xf32>
    %70 = math.sin %69 : vector<8x1xf32>
    %c3_i32 = arith.constant 3 : i32
    %71 = vector.broadcast %c3_i32 : i32 to vector<8x8xi32>
    %72 = arith.shrsi %1, %71 : vector<8x8xi32>
    %c1_i32_16 = arith.constant 1 : i32
    %73 = vector.broadcast %c1_i32_16 : i32 to vector<8x8xi32>
    %74 = arith.andi %72, %73 : vector<8x8xi32>
    %75 = arith.xori %74, %54 : vector<8x8xi32>
    %c1_i32_17 = arith.constant 1 : i32
    %76 = vector.broadcast %c1_i32_17 : i32 to vector<8x8xi32>
    %77 = arith.cmpi eq, %75, %76 : vector<8x8xi32>
    %78 = vector.shape_cast %70 : vector<8x1xf32> to vector<8x1xf32>
    %79 = vector.broadcast %78 : vector<8x1xf32> to vector<8x8xf32>
    %80 = vector.shape_cast %67 : vector<8x1xf32> to vector<8x1xf32>
    %81 = vector.broadcast %80 : vector<8x1xf32> to vector<8x8xf32>
    %82 = arith.select %77, %79, %81 : vector<8x8xi1>, vector<8x8xf32>
    %83 = arith.mulf %63, %82 : vector<8x8xf32>
    %84 = vector.extract_strided_slice %0 {offsets = [0, 4], sizes = [8, 1], strides = [1, 1]} : vector<8x8xf32> to vector<8x1xf32>
    %cst_18 = arith.constant 5.000000e-01 : f32
    %85 = vector.broadcast %cst_18 : f32 to vector<8x1xf32>
    %86 = arith.mulf %84, %85 : vector<8x1xf32>
    %87 = math.cos %86 : vector<8x1xf32>
    %cst_19 = arith.constant 5.000000e-01 : f32
    %88 = vector.broadcast %cst_19 : f32 to vector<8x1xf32>
    %89 = arith.mulf %84, %88 : vector<8x1xf32>
    %90 = math.sin %89 : vector<8x1xf32>
    %c4_i32 = arith.constant 4 : i32
    %91 = vector.broadcast %c4_i32 : i32 to vector<8x8xi32>
    %92 = arith.shrsi %1, %91 : vector<8x8xi32>
    %c1_i32_20 = arith.constant 1 : i32
    %93 = vector.broadcast %c1_i32_20 : i32 to vector<8x8xi32>
    %94 = arith.andi %92, %93 : vector<8x8xi32>
    %95 = arith.xori %94, %74 : vector<8x8xi32>
    %c1_i32_21 = arith.constant 1 : i32
    %96 = vector.broadcast %c1_i32_21 : i32 to vector<8x8xi32>
    %97 = arith.cmpi eq, %95, %96 : vector<8x8xi32>
    %98 = vector.shape_cast %90 : vector<8x1xf32> to vector<8x1xf32>
    %99 = vector.broadcast %98 : vector<8x1xf32> to vector<8x8xf32>
    %100 = vector.shape_cast %87 : vector<8x1xf32> to vector<8x1xf32>
    %101 = vector.broadcast %100 : vector<8x1xf32> to vector<8x8xf32>
    %102 = arith.select %97, %99, %101 : vector<8x8xi1>, vector<8x8xf32>
    %103 = arith.mulf %83, %102 : vector<8x8xf32>
    %104 = vector.extract_strided_slice %0 {offsets = [0, 5], sizes = [8, 1], strides = [1, 1]} : vector<8x8xf32> to vector<8x1xf32>
    %cst_22 = arith.constant 5.000000e-01 : f32
    %105 = vector.broadcast %cst_22 : f32 to vector<8x1xf32>
    %106 = arith.mulf %104, %105 : vector<8x1xf32>
    %107 = math.cos %106 : vector<8x1xf32>
    %cst_23 = arith.constant 5.000000e-01 : f32
    %108 = vector.broadcast %cst_23 : f32 to vector<8x1xf32>
    %109 = arith.mulf %104, %108 : vector<8x1xf32>
    %110 = math.sin %109 : vector<8x1xf32>
    %c5_i32 = arith.constant 5 : i32
    %111 = vector.broadcast %c5_i32 : i32 to vector<8x8xi32>
    %112 = arith.shrsi %1, %111 : vector<8x8xi32>
    %c1_i32_24 = arith.constant 1 : i32
    %113 = vector.broadcast %c1_i32_24 : i32 to vector<8x8xi32>
    %114 = arith.andi %112, %113 : vector<8x8xi32>
    %115 = arith.xori %114, %94 : vector<8x8xi32>
    %c1_i32_25 = arith.constant 1 : i32
    %116 = vector.broadcast %c1_i32_25 : i32 to vector<8x8xi32>
    %117 = arith.cmpi eq, %115, %116 : vector<8x8xi32>
    %118 = vector.shape_cast %110 : vector<8x1xf32> to vector<8x1xf32>
    %119 = vector.broadcast %118 : vector<8x1xf32> to vector<8x8xf32>
    %120 = vector.shape_cast %107 : vector<8x1xf32> to vector<8x1xf32>
    %121 = vector.broadcast %120 : vector<8x1xf32> to vector<8x8xf32>
    %122 = arith.select %117, %119, %121 : vector<8x8xi1>, vector<8x8xf32>
    %123 = arith.mulf %103, %122 : vector<8x8xf32>
    %124 = vector.extract_strided_slice %0 {offsets = [0, 6], sizes = [8, 1], strides = [1, 1]} : vector<8x8xf32> to vector<8x1xf32>
    %cst_26 = arith.constant 5.000000e-01 : f32
    %125 = vector.broadcast %cst_26 : f32 to vector<8x1xf32>
    %126 = arith.mulf %124, %125 : vector<8x1xf32>
    %127 = math.cos %126 : vector<8x1xf32>
    %cst_27 = arith.constant 5.000000e-01 : f32
    %128 = vector.broadcast %cst_27 : f32 to vector<8x1xf32>
    %129 = arith.mulf %124, %128 : vector<8x1xf32>
    %130 = math.sin %129 : vector<8x1xf32>
    %c6_i32 = arith.constant 6 : i32
    %131 = vector.broadcast %c6_i32 : i32 to vector<8x8xi32>
    %132 = arith.shrsi %1, %131 : vector<8x8xi32>
    %c1_i32_28 = arith.constant 1 : i32
    %133 = vector.broadcast %c1_i32_28 : i32 to vector<8x8xi32>
    %134 = arith.andi %132, %133 : vector<8x8xi32>
    %135 = arith.xori %134, %114 : vector<8x8xi32>
    %c1_i32_29 = arith.constant 1 : i32
    %136 = vector.broadcast %c1_i32_29 : i32 to vector<8x8xi32>
    %137 = arith.cmpi eq, %135, %136 : vector<8x8xi32>
    %138 = vector.shape_cast %130 : vector<8x1xf32> to vector<8x1xf32>
    %139 = vector.broadcast %138 : vector<8x1xf32> to vector<8x8xf32>
    %140 = vector.shape_cast %127 : vector<8x1xf32> to vector<8x1xf32>
    %141 = vector.broadcast %140 : vector<8x1xf32> to vector<8x8xf32>
    %142 = arith.select %137, %139, %141 : vector<8x8xi1>, vector<8x8xf32>
    %143 = arith.mulf %123, %142 : vector<8x8xf32>
    %144 = vector.extract_strided_slice %0 {offsets = [0, 7], sizes = [8, 1], strides = [1, 1]} : vector<8x8xf32> to vector<8x1xf32>
    %cst_30 = arith.constant 5.000000e-01 : f32
    %145 = vector.broadcast %cst_30 : f32 to vector<8x1xf32>
    %146 = arith.mulf %144, %145 : vector<8x1xf32>
    %147 = math.cos %146 : vector<8x1xf32>
    %cst_31 = arith.constant 5.000000e-01 : f32
    %148 = vector.broadcast %cst_31 : f32 to vector<8x1xf32>
    %149 = arith.mulf %144, %148 : vector<8x1xf32>
    %150 = math.sin %149 : vector<8x1xf32>
    %c7_i32 = arith.constant 7 : i32
    %151 = vector.broadcast %c7_i32 : i32 to vector<8x8xi32>
    %152 = arith.shrsi %1, %151 : vector<8x8xi32>
    %c1_i32_32 = arith.constant 1 : i32
    %153 = vector.broadcast %c1_i32_32 : i32 to vector<8x8xi32>
    %154 = arith.andi %152, %153 : vector<8x8xi32>
    %155 = arith.xori %154, %134 : vector<8x8xi32>
    %c1_i32_33 = arith.constant 1 : i32
    %156 = vector.broadcast %c1_i32_33 : i32 to vector<8x8xi32>
    %157 = arith.cmpi eq, %155, %156 : vector<8x8xi32>
    %158 = vector.shape_cast %150 : vector<8x1xf32> to vector<8x1xf32>
    %159 = vector.broadcast %158 : vector<8x1xf32> to vector<8x8xf32>
    %160 = vector.shape_cast %147 : vector<8x1xf32> to vector<8x1xf32>
    %161 = vector.broadcast %160 : vector<8x1xf32> to vector<8x8xf32>
    %162 = arith.select %157, %159, %161 : vector<8x8xi1>, vector<8x8xf32>
    %163 = arith.mulf %143, %162 : vector<8x8xf32>
    %164 = arith.mulf %163, %163 : vector<8x8xf32>
    %165 = vector.extract_strided_slice %164 {offsets = [0, 0], sizes = [8, 1], strides = [1, 1]} : vector<8x8xf32> to vector<8x1xf32>
    %c0_34 = arith.constant 0 : index
    %c0_35 = arith.constant 0 : index
    %166 = vector.load %arg2[%c0_34, %c0_35] : memref<8x128xf32, #tpu.memory_space<vmem>>, vector<1x128xf32>
    %167 = vector.broadcast %165 : vector<8x1xf32> to vector<8x128xf32>
    %168 = vector.broadcast %166 : vector<1x128xf32> to vector<8x128xf32>
    %169 = arith.mulf %167, %168 : vector<8x128xf32>
    %170 = vector.extract_strided_slice %164 {offsets = [0, 1], sizes = [8, 1], strides = [1, 1]} : vector<8x8xf32> to vector<8x1xf32>
    %c1 = arith.constant 1 : index
    %c0_36 = arith.constant 0 : index
    %171 = vector.load %arg2[%c1, %c0_36] : memref<8x128xf32, #tpu.memory_space<vmem>>, vector<1x128xf32>
    %172 = vector.broadcast %170 : vector<8x1xf32> to vector<8x128xf32>
    %173 = vector.broadcast %171 : vector<1x128xf32> to vector<8x128xf32>
    %174 = arith.mulf %172, %173 : vector<8x128xf32>
    %175 = arith.addf %169, %174 : vector<8x128xf32>
    %176 = vector.extract_strided_slice %164 {offsets = [0, 2], sizes = [8, 1], strides = [1, 1]} : vector<8x8xf32> to vector<8x1xf32>
    %c2 = arith.constant 2 : index
    %c0_37 = arith.constant 0 : index
    %177 = vector.load %arg2[%c2, %c0_37] : memref<8x128xf32, #tpu.memory_space<vmem>>, vector<1x128xf32>
    %178 = vector.broadcast %176 : vector<8x1xf32> to vector<8x128xf32>
    %179 = vector.broadcast %177 : vector<1x128xf32> to vector<8x128xf32>
    %180 = arith.mulf %178, %179 : vector<8x128xf32>
    %181 = arith.addf %175, %180 : vector<8x128xf32>
    %182 = vector.extract_strided_slice %164 {offsets = [0, 3], sizes = [8, 1], strides = [1, 1]} : vector<8x8xf32> to vector<8x1xf32>
    %c3 = arith.constant 3 : index
    %c0_38 = arith.constant 0 : index
    %183 = vector.load %arg2[%c3, %c0_38] : memref<8x128xf32, #tpu.memory_space<vmem>>, vector<1x128xf32>
    %184 = vector.broadcast %182 : vector<8x1xf32> to vector<8x128xf32>
    %185 = vector.broadcast %183 : vector<1x128xf32> to vector<8x128xf32>
    %186 = arith.mulf %184, %185 : vector<8x128xf32>
    %187 = arith.addf %181, %186 : vector<8x128xf32>
    %188 = vector.extract_strided_slice %164 {offsets = [0, 4], sizes = [8, 1], strides = [1, 1]} : vector<8x8xf32> to vector<8x1xf32>
    %c4 = arith.constant 4 : index
    %c0_39 = arith.constant 0 : index
    %189 = vector.load %arg2[%c4, %c0_39] : memref<8x128xf32, #tpu.memory_space<vmem>>, vector<1x128xf32>
    %190 = vector.broadcast %188 : vector<8x1xf32> to vector<8x128xf32>
    %191 = vector.broadcast %189 : vector<1x128xf32> to vector<8x128xf32>
    %192 = arith.mulf %190, %191 : vector<8x128xf32>
    %193 = arith.addf %187, %192 : vector<8x128xf32>
    %194 = vector.extract_strided_slice %164 {offsets = [0, 5], sizes = [8, 1], strides = [1, 1]} : vector<8x8xf32> to vector<8x1xf32>
    %c5 = arith.constant 5 : index
    %c0_40 = arith.constant 0 : index
    %195 = vector.load %arg2[%c5, %c0_40] : memref<8x128xf32, #tpu.memory_space<vmem>>, vector<1x128xf32>
    %196 = vector.broadcast %194 : vector<8x1xf32> to vector<8x128xf32>
    %197 = vector.broadcast %195 : vector<1x128xf32> to vector<8x128xf32>
    %198 = arith.mulf %196, %197 : vector<8x128xf32>
    %199 = arith.addf %193, %198 : vector<8x128xf32>
    %200 = vector.extract_strided_slice %164 {offsets = [0, 6], sizes = [8, 1], strides = [1, 1]} : vector<8x8xf32> to vector<8x1xf32>
    %c6 = arith.constant 6 : index
    %c0_41 = arith.constant 0 : index
    %201 = vector.load %arg2[%c6, %c0_41] : memref<8x128xf32, #tpu.memory_space<vmem>>, vector<1x128xf32>
    %202 = vector.broadcast %200 : vector<8x1xf32> to vector<8x128xf32>
    %203 = vector.broadcast %201 : vector<1x128xf32> to vector<8x128xf32>
    %204 = arith.mulf %202, %203 : vector<8x128xf32>
    %205 = arith.addf %199, %204 : vector<8x128xf32>
    %206 = vector.extract_strided_slice %164 {offsets = [0, 7], sizes = [8, 1], strides = [1, 1]} : vector<8x8xf32> to vector<8x1xf32>
    %c7 = arith.constant 7 : index
    %c0_42 = arith.constant 0 : index
    %207 = vector.load %arg2[%c7, %c0_42] : memref<8x128xf32, #tpu.memory_space<vmem>>, vector<1x128xf32>
    %208 = vector.broadcast %206 : vector<8x1xf32> to vector<8x128xf32>
    %209 = vector.broadcast %207 : vector<1x128xf32> to vector<8x128xf32>
    %210 = arith.mulf %208, %209 : vector<8x128xf32>
    %211 = arith.addf %205, %210 : vector<8x128xf32>
    %c0_43 = arith.constant 0 : index
    %c0_44 = arith.constant 0 : index
    %212 = vector.load %arg3[%c0_43, %c0_44] : memref<1x128xf32, #tpu.memory_space<vmem>>, vector<1x128xf32>
    %213 = vector.broadcast %212 : vector<1x128xf32> to vector<8x128xf32>
    %214 = arith.addf %211, %213 : vector<8x128xf32>
    %c0_45 = arith.constant 0 : index
    %c0_46 = arith.constant 0 : index
    %215 = vector.load %arg4[%c0_45, %c0_46] : memref<8x128xf32, #tpu.memory_space<vmem>>, vector<8x128xf32>
    tpu.vector_store %arg4[%c0_45, %c0_46], %214 {strides = array<i32>} : memref<8x128xf32, #tpu.memory_space<vmem>>, vector<8x128xf32>,
    return
  }
  func.func @transform_0(%arg0: i32) -> (i32, i32) {
    %c0_i32 = arith.constant 0 : i32
    %c0_i32_0 = arith.constant 0 : i32
    return %arg0, %c0_i32 : i32, i32
  }
  func.func @transform_1(%arg0: i32) -> (i32, i32) {
    %c0_i32 = arith.constant 0 : i32
    %c0_i32_0 = arith.constant 0 : i32
    %c0_i32_1 = arith.constant 0 : i32
    return %c0_i32, %c0_i32_0 : i32, i32
  }
  func.func @transform_2(%arg0: i32) -> (i32, i32) {
    %c0_i32 = arith.constant 0 : i32
    %c0_i32_0 = arith.constant 0 : i32
    %c0_i32_1 = arith.constant 0 : i32
    return %c0_i32, %c0_i32_0 : i32, i32
  }
  func.func @transform_3(%arg0: i32) -> (i32, i32) {
    %c0_i32 = arith.constant 0 : i32
    %c0_i32_0 = arith.constant 0 : i32
    return %arg0, %c0_i32 : i32, i32
  }
}

</mosaic_0001>

<llo_original>
// kernel: qgnn_forward.1
$region0: #{qgnn_forward.1}
  #allocation0 [shape = 'u32[]', space=smem, size = 0x4, offset = 0x4, fixed_abs, tag = 'smem constant byte address 0x4 - core index']
  #allocation1 [shape = 'u32[144,128]{1,0:T(1,128)}', space=vmem, size = 0x12000, scoped, tag = 'internal scratch']
  %s0 = inlined_call_operand.vmem [shape: f32[8,8], index: 0, kind: input, shape index: {}]
  %s1 = inlined_call_operand.vmem [shape: f32[8,128], index: 1, kind: input, shape index: {}]
  %s2 = inlined_call_operand.vmem [shape: f32[1,128], index: 2, kind: input, shape index: {}]
  %s3 = inlined_call_operand.vmem [shape: f32[8,128], index: 3, kind: output, shape index: {}]
  %s4 = sld [smem:[#allocation0]]
  $region22: #{qgnn_forward.1} parent=0
    _
  %s6 = ssub.s32 1, %s4
  %s7 = scalar_select 0, %s6, %s4
  // Predicated region
  $region2: #{qgnn_forward.1} parent=0 // pred_check
    _
  $region3: #{qgnn_forward.1} parent=0 // pred_check_branch
    %9 = sbr.rel (0) target = $region5
  $region4: #{qgnn_forward.1} parent=0 // pred_region
    _
  $region5: #{qgnn_forward.1} parent=0 // pred_fallthru
    _
  // Predicated region
  $region6: #{qgnn_forward.1} parent=0 // pred_check
    _
  $region7: #{qgnn_forward.1} parent=0 // pred_check_branch
    %11 = sbr.rel (0) target = $region9
  $region8: #{qgnn_forward.1} parent=0 // pred_region
    _
  $region9: #{qgnn_forward.1} parent=0 // pred_fallthru
    _
  // Predicated region
  $region10: #{qgnn_forward.1} parent=0 // pred_check
    _
  $region11: #{qgnn_forward.1} parent=0 // pred_check_branch
    %13 = sbr.rel (0) target = $region13
  $region12: #{qgnn_forward.1} parent=0 // pred_region
    _
  $region13: #{qgnn_forward.1} parent=0 // pred_fallthru
    _
  %v14 = vld [vmem:[%s0] sm:$0xff]
  %v15 = vlaneseq
  %v16 = vand.u32 %v15, 127
  %v17 = vmul.f32 %v14, 0.5
  %v18 = vand.u32 2147483647, %v17
  %vm19 = vcmp.le.f32.partialorder %v18, 0.7853982
  %vm20 = vcmp.lt.s32.totalorder %v17, 0
  %v21 = vand.u32 %v17, 2139095040
  %v22 = vshrl.u32 %v21, 23
  %v23 = vsub.s32 %v22, 127
  %v24 = vand.u32 2147483647, %v17
  %v25 = vand.u32 %v24, 8388607
  %v26 = vor.u32 %v25, 8388608
  %v27 = vsub.s32 0, %v26
  %v28 = vadd.s32 %v23, 1
  %vm29 = vcmp.gt.s32.totalorder %v28, 0
  %v30 = vsel %vm29, %v28, 0
  %v31 = vshrl.u32 %v30, 5
  %v32 = vand.u32 %v30, 31
  %v33 = vsub.s32 32, %v32
  %v34 = vshrl.u32 683565275, %v33
  %v35 = vshll.u32 683565275, %v32
  %v36 = vshrl.u32 2475754826, %v33
  %v37 = vor.u32 %v35, %v36
  %v38 = vshll.u32 2475754826, %v32
  %v39 = vshrl.u32 2131351028, %v33
  %v40 = vor.u32 %v38, %v39
  %v41 = vshll.u32 2131351028, %v32
  %v42 = vshrl.u32 2102212464, %v33
  %v43 = vor.u32 %v41, %v42
  %v44 = vshll.u32 2102212464, %v32
  %v45 = vshrl.u32 920167782, %v33
  %v46 = vor.u32 %v44, %v45
  %v47 = vshll.u32 920167782, %v32
  %v48 = vshrl.u32 1326507024, %v33
  %v49 = vor.u32 %v47, %v48
  %vm50 = vcmp.lt.s32.totalorder %v31, 1
  %vm51 = vcmp.lt.s32.totalorder %v31, 2
  %vm52 = vcmp.lt.s32.totalorder %v31, 3
  %vm53 = vcmp.lt.s32.totalorder %v31, 4
  %v54 = vsel %vm50, %v34, %v37
  %v55 = vsel %vm53, %v43, 2102212464
  %v56 = vsel %vm52, %v40, %v55
  %v57 = vsel %vm51, %v54, %v56
  %v58 = vsel %vm50, %v37, %v40
  %v59 = vsel %vm53, %v46, 920167782
  %v60 = vsel %vm52, %v43, %v59
  %v61 = vsel %vm51, %v58, %v60
  %v62 = vsel %vm50, %v40, %v43
  %v63 = vsel %vm53, %v49, 1326507024
  %v64 = vsel %vm52, %v46, %v63
  %v65 = vsel %vm51, %v62, %v64
  %v66 = vshll.u32 %v26, 8
  %v67 = vmul.u32.u64.compose %v66, %v65
  %v68 = vextract.low.u32 %v67
  %v69 = vextract.high.u32 %v67
  %v70 = vmul.u32.u64.compose %v66, %v61
  %v71 = vextract.low.u32 %v70
  %v72 = vextract.high.u32 %v70
  %v73 = vmul.u32 %v66, %v57
  %v74 = vadd.s32 %v69, %v71
  %vm75 = vc.u32 %v69, %v71
  %v76 = vadd.s32 %v72, 1
  %v77 = vsel %vm75, %v76, %v72
  %v78 = vadd.s32 %v73, %v77
  %v79 = vadd.s32 %v78, 536870912
  %v80 = vshrl.u32 %v79, 30
  %v81 = vshll.u32 %v80, 30
  %v82 = vsub.s32 %v78, %v81
  %vm83 = vcmp.lt.s32.totalorder %v82, 0
  %v84 = vsub.s32 0, %v82
  %v85 = vsel %vm83, %v84, %v82
  %v86 = vclz %v85
  %v87 = vsub.s32 %v86, 2
  %vm88 = vcmp.gt.s32.totalorder 0, %v87
  %v89 = vsel %vm88, 0, %v87
  %v90 = vsub.s32 32, %v89
  %v91 = vshll.u32 %v82, %v89
  %v92 = vshrl.u32 %v74, %v90
  %v93 = vor.u32 %v91, %v92
  %v94 = vsub.s32 4294967266, %v89
  %v95 = vadd.s32 %v94, 127
  %v96 = vshll.u32 %v95, 23
  %v97 = vor.u32 4788187, %v96
  %v98 = vand.u32 2147483647, %v97
  %v100 = vcvt.s32.f32 %v93
  %v101 = vmul.f32 %v100, %v98
  %v102 = vxor.u32 %v101, 2147483648
  %v103 = vsel %vm20, %v102, %v101
  %v104 = vsub.s32 4, %v80
  %v105 = vsel %vm20, %v104, %v80
  %v106 = vsel %vm19, %v17, %v103
  %v107 = vsel %vm19, 0, %v105
  %v108 = vcosq.f32.pop %v106
  %v109 = vsinq.f32.pop %v106
  %vm110 = vweird.f32 %v17
  %v111 = vand.u32 %v107, 3
  %vm112 = vcmp.lt.s32.totalorder %v111, 2
  %vm113 = vcmp.eq.s32.totalorder %v111, 0
  %v114 = vxor.u32 %v109, 2147483648
  %v115 = vsel %vm113, %v108, %v114
  %vm116 = vcmp.eq.s32.totalorder %v111, 2
  %v117 = vxor.u32 %v108, 2147483648
  %v118 = vsel %vm116, %v117, %v109
  %v119 = vsel %vm112, %v115, %v118
  %v120 = vsel %vm110, nan, %v119
  %v121 = vand.u32 2147483647, %v17
  %vm122 = vcmp.le.f32.partialorder %v121, 0.7853982
  %vm123 = vcmp.lt.s32.totalorder %v17, 0
  %v124 = vand.u32 %v17, 2139095040
  %v125 = vshrl.u32 %v124, 23
  %v126 = vsub.s32 %v125, 127
  %v127 = vand.u32 2147483647, %v17
  %v128 = vand.u32 %v127, 8388607
  %v129 = vor.u32 %v128, 8388608
  %v130 = vsub.s32 0, %v129
  %v131 = vadd.s32 %v126, 1
  %vm132 = vcmp.gt.s32.totalorder %v131, 0
  %v133 = vsel %vm132, %v131, 0
  %v134 = vshrl.u32 %v133, 5
  %v135 = vand.u32 %v133, 31
  %v136 = vsub.s32 32, %v135
  %v137 = vshrl.u32 683565275, %v136
  %v138 = vshll.u32 683565275, %v135
  %v139 = vshrl.u32 2475754826, %v136
  %v140 = vor.u32 %v138, %v139
  %v141 = vshll.u32 2475754826, %v135
  %v142 = vshrl.u32 2131351028, %v136
  %v143 = vor.u32 %v141, %v142
  %v144 = vshll.u32 2131351028, %v135
  %v145 = vshrl.u32 2102212464, %v136
  %v146 = vor.u32 %v144, %v145
  %v147 = vshll.u32 2102212464, %v135
  %v148 = vshrl.u32 920167782, %v136
  %v149 = vor.u32 %v147, %v148
  %v150 = vshll.u32 920167782, %v135
  %v151 = vshrl.u32 1326507024, %v136
  %v152 = vor.u32 %v150, %v151
  %vm153 = vcmp.lt.s32.totalorder %v134, 1
  %vm154 = vcmp.lt.s32.totalorder %v134, 2
  %vm155 = vcmp.lt.s32.totalorder %v134, 3
  %vm156 = vcmp.lt.s32.totalorder %v134, 4
  %v157 = vsel %vm153, %v137, %v140
  %v158 = vsel %vm156, %v146, 2102212464
  %v159 = vsel %vm155, %v143, %v158
  %v160 = vsel %vm154, %v157, %v159
  %v161 = vsel %vm153, %v140, %v143
  %v162 = vsel %vm156, %v149, 920167782
  %v163 = vsel %vm155, %v146, %v162
  %v164 = vsel %vm154, %v161, %v163
  %v165 = vsel %vm153, %v143, %v146
  %v166 = vsel %vm156, %v152, 1326507024
  %v167 = vsel %vm155, %v149, %v166
  %v168 = vsel %vm154, %v165, %v167
  %v169 = vshll.u32 %v129, 8
  %v170 = vmul.u32.u64.compose %v169, %v168
  %v171 = vextract.low.u32 %v170
  %v172 = vextract.high.u32 %v170
  %v173 = vmul.u32.u64.compose %v169, %v164
  %v174 = vextract.low.u32 %v173
  %v175 = vextract.high.u32 %v173
  %v176 = vmul.u32 %v169, %v160
  %v177 = vadd.s32 %v172, %v174
  %vm178 = vc.u32 %v172, %v174
  %v179 = vadd.s32 %v175, 1
  %v180 = vsel %vm178, %v179, %v175
  %v181 = vadd.s32 %v176, %v180
  %v182 = vadd.s32 %v181, 536870912
  %v183 = vshrl.u32 %v182, 30
  %v184 = vshll.u32 %v183, 30
  %v185 = vsub.s32 %v181, %v184
  %vm186 = vcmp.lt.s32.totalorder %v185, 0
  %v187 = vsub.s32 0, %v185
  %v188 = vsel %vm186, %v187, %v185
  %v189 = vclz %v188
  %v190 = vsub.s32 %v189, 2
  %vm191 = vcmp.gt.s32.totalorder 0, %v190
  %v192 = vsel %vm191, 0, %v190
  %v193 = vsub.s32 32, %v192
  %v194 = vshll.u32 %v185, %v192
  %v195 = vshrl.u32 %v177, %v193
  %v196 = vor.u32 %v194, %v195
  %v197 = vsub.s32 4294967266, %v192
  %v198 = vadd.s32 %v197, 127
  %v199 = vshll.u32 %v198, 23
  %v200 = vor.u32 4788187, %v199
  %v201 = vand.u32 2147483647, %v200
  %v203 = vcvt.s32.f32 %v196
  %v204 = vmul.f32 %v203, %v201
  %v205 = vxor.u32 %v204, 2147483648
  %v206 = vsel %vm123, %v205, %v204
  %v207 = vsub.s32 4, %v183
  %v208 = vsel %vm123, %v207, %v183
  %v209 = vsel %vm122, %v17, %v206
  %v210 = vsel %vm122, 0, %v208
  %v211 = vcosq.f32.pop %v209
  %v212 = vsinq.f32.pop %v209
  %vm213 = vweird.f32 %v17
  %v214 = vadd.s32 %v210, 3
  %v215 = vand.u32 %v214, 3
  %vm216 = vcmp.lt.s32.totalorder %v215, 2
  %vm217 = vcmp.eq.s32.totalorder %v215, 0
  %v218 = vxor.u32 %v212, 2147483648
  %v219 = vsel %vm217, %v211, %v218
  %vm220 = vcmp.eq.s32.totalorder %v215, 2
  %v221 = vxor.u32 %v211, 2147483648
  %v222 = vsel %vm220, %v221, %v212
  %v223 = vsel %vm216, %v219, %v222
  %v224 = vsel %vm213, nan, %v223
  %v225 = vand.u32 %v16, 1
  %vm226 = vcmp.eq.s32.totalorder %v225, 1
  %228 = vset.pattern.permute.xlu0 0
  %229 = vperm.xlu0 %228, %v224
  %v230 = vpop.permute.xlu0 %229
  %233 = vset.pattern.permute.xlu0 0
  %234 = vperm.xlu0 %233, %v120
  %v235 = vpop.permute.xlu0 %234
  %v237 = vsel %vm226, %v230, %v235
  %v238 = vshra.s32 %v16, 1
  %v239 = vand.u32 %v238, 1
  %v240 = vxor.u32 %v239, %v225
  %vm241 = vcmp.eq.s32.totalorder %v240, 1
  %242 = vset.pattern.permute.xlu0 1
  %243 = vperm.xlu0 %242, %v224
  %v244 = vpop.permute.xlu0 %243
  %246 = vset.pattern.permute.xlu0 1
  %247 = vperm.xlu0 %246, %v120
  %v248 = vpop.permute.xlu0 %247
  %v250 = vsel %vm241, %v244, %v248
  %v251 = vmul.f32 %v237, %v250
  %v252 = vshra.s32 %v16, 2
  %v253 = vand.u32 %v252, 1
  %v254 = vxor.u32 %v253, %v239
  %vm255 = vcmp.eq.s32.totalorder %v254, 1
  %256 = vset.pattern.permute.xlu0 2
  %257 = vperm.xlu0 %256, %v224
  %v258 = vpop.permute.xlu0 %257
  %260 = vset.pattern.permute.xlu0 2
  %261 = vperm.xlu0 %260, %v120
  %v262 = vpop.permute.xlu0 %261
  %v264 = vsel %vm255, %v258, %v262
  %v265 = vmul.f32 %v251, %v264
  %v266 = vshra.s32 %v16, 3
  %v267 = vand.u32 %v266, 1
  %v268 = vxor.u32 %v267, %v253
  %vm269 = vcmp.eq.s32.totalorder %v268, 1
  %270 = vset.pattern.permute.xlu0 3
  %271 = vperm.xlu0 %270, %v224
  %v272 = vpop.permute.xlu0 %271
  %274 = vset.pattern.permute.xlu0 3
  %275 = vperm.xlu0 %274, %v120
  %v276 = vpop.permute.xlu0 %275
  %v278 = vsel %vm269, %v272, %v276
  %v279 = vmul.f32 %v265, %v278
  %v280 = vshra.s32 %v16, 4
  %v281 = vand.u32 %v280, 1
  %v282 = vxor.u32 %v281, %v267
  %vm283 = vcmp.eq.s32.totalorder %v282, 1
  %284 = vset.pattern.permute.xlu0 4
  %285 = vperm.xlu0 %284, %v224
  %v286 = vpop.permute.xlu0 %285
  %288 = vset.pattern.permute.xlu0 4
  %289 = vperm.xlu0 %288, %v120
  %v290 = vpop.permute.xlu0 %289
  %v292 = vsel %vm283, %v286, %v290
  %v293 = vmul.f32 %v279, %v292
  %v294 = vshra.s32 %v16, 5
  %v295 = vand.u32 %v294, 1
  %v296 = vxor.u32 %v295, %v281
  %vm297 = vcmp.eq.s32.totalorder %v296, 1
  %298 = vset.pattern.permute.xlu0 5
  %299 = vperm.xlu0 %298, %v224
  %v300 = vpop.permute.xlu0 %299
  %302 = vset.pattern.permute.xlu0 5
  %303 = vperm.xlu0 %302, %v120
  %v304 = vpop.permute.xlu0 %303
  %v306 = vsel %vm297, %v300, %v304
  %v307 = vmul.f32 %v293, %v306
  %v308 = vshra.s32 %v16, 6
  %v309 = vand.u32 %v308, 1
  %v310 = vxor.u32 %v309, %v295
  %vm311 = vcmp.eq.s32.totalorder %v310, 1
  %312 = vset.pattern.permute.xlu0 6
  %313 = vperm.xlu0 %312, %v224
  %v314 = vpop.permute.xlu0 %313
  %316 = vset.pattern.permute.xlu0 6
  %317 = vperm.xlu0 %316, %v120
  %v318 = vpop.permute.xlu0 %317
  %v320 = vsel %vm311, %v314, %v318
  %v321 = vmul.f32 %v307, %v320
  %v322 = vshra.s32 %v16, 7
  %v323 = vand.u32 %v322, 1
  %v324 = vxor.u32 %v323, %v309
  %vm325 = vcmp.eq.s32.totalorder %v324, 1
  %326 = vset.pattern.permute.xlu0 7
  %327 = vperm.xlu0 %326, %v224
  %v328 = vpop.permute.xlu0 %327
  %330 = vset.pattern.permute.xlu0 7
  %331 = vperm.xlu0 %330, %v120
  %v332 = vpop.permute.xlu0 %331
  %v334 = vsel %vm325, %v328, %v332
  %v335 = vmul.f32 %v321, %v334
  %v336 = vmul.f32 %v335, %v335
  %v337 = vld [vmem:[%s1] sm:$0x1]
  %339 = vset.pattern.permute.xlu0 0
  %340 = vperm.xlu0 %339, %v336
  %v341 = vpop.permute.xlu0 %340
  %v343 = vlaneseq
  %v344 = vshrl.u32 %v343, 7
  %v345 = vsub.s32 0, %v344
  %v346 = vrot.slane %v337, %v345
  %v347 = vmul.f32 %v341, %v346
  %v348 = vld [vmem:[%s1 + $0x1] sm:$0x1]
  %349 = vset.pattern.permute.xlu0 1
  %350 = vperm.xlu0 %349, %v336
  %v351 = vpop.permute.xlu0 %350
  %v353 = vlaneseq
  %v354 = vshrl.u32 %v353, 7
  %v355 = vsub.s32 0, %v354
  %v356 = vrot.slane %v348, %v355
  %v357 = vmul.f32 %v351, %v356
  %v358 = vadd.f32 %v347, %v357
  %v359 = vld [vmem:[%s1 + $0x2] sm:$0x1]
  %360 = vset.pattern.permute.xlu0 2
  %361 = vperm.xlu0 %360, %v336
  %v362 = vpop.permute.xlu0 %361
  %v364 = vlaneseq
  %v365 = vshrl.u32 %v364, 7
  %v366 = vsub.s32 0, %v365
  %v367 = vrot.slane %v359, %v366
  %v368 = vmul.f32 %v362, %v367
  %v369 = vadd.f32 %v358, %v368
  %v370 = vld [vmem:[%s1 + $0x3] sm:$0x1]
  %371 = vset.pattern.permute.xlu0 3
  %372 = vperm.xlu0 %371, %v336
  %v373 = vpop.permute.xlu0 %372
  %v375 = vlaneseq
  %v376 = vshrl.u32 %v375, 7
  %v377 = vsub.s32 0, %v376
  %v378 = vrot.slane %v370, %v377
  %v379 = vmul.f32 %v373, %v378
  %v380 = vadd.f32 %v369, %v379
  %v381 = vld [vmem:[%s1 + $0x4] sm:$0x1]
  %382 = vset.pattern.permute.xlu0 4
  %383 = vperm.xlu0 %382, %v336
  %v384 = vpop.permute.xlu0 %383
  %v386 = vlaneseq
  %v387 = vshrl.u32 %v386, 7
  %v388 = vsub.s32 0, %v387
  %v389 = vrot.slane %v381, %v388
  %v390 = vmul.f32 %v384, %v389
  %v391 = vadd.f32 %v380, %v390
  %v392 = vld [vmem:[%s1 + $0x5] sm:$0x1]
  %393 = vset.pattern.permute.xlu0 5
  %394 = vperm.xlu0 %393, %v336
  %v395 = vpop.permute.xlu0 %394
  %v397 = vlaneseq
  %v398 = vshrl.u32 %v397, 7
  %v399 = vsub.s32 0, %v398
  %v400 = vrot.slane %v392, %v399
  %v401 = vmul.f32 %v395, %v400
  %v402 = vadd.f32 %v391, %v401
  %v403 = vld [vmem:[%s1 + $0x6] sm:$0x1]
  %404 = vset.pattern.permute.xlu0 6
  %405 = vperm.xlu0 %404, %v336
  %v406 = vpop.permute.xlu0 %405
  %v408 = vlaneseq
  %v409 = vshrl.u32 %v408, 7
  %v410 = vsub.s32 0, %v409
  %v411 = vrot.slane %v403, %v410
  %v412 = vmul.f32 %v406, %v411
  %v413 = vadd.f32 %v402, %v412
  %v414 = vld [vmem:[%s1 + $0x7] sm:$0x1]
  %415 = vset.pattern.permute.xlu0 7
  %416 = vperm.xlu0 %415, %v336
  %v417 = vpop.permute.xlu0 %416
  %v419 = vlaneseq
  %v420 = vshrl.u32 %v419, 7
  %v421 = vsub.s32 0, %v420
  %v422 = vrot.slane %v414, %v421
  %v423 = vmul.f32 %v417, %v422
  %v424 = vadd.f32 %v413, %v423
  %v425 = vld [vmem:[%s2] sm:$0x1]
  %v427 = vlaneseq
  %v428 = vshrl.u32 %v427, 7
  %v429 = vsub.s32 0, %v428
  %v430 = vrot.slane %v425, %v429
  %v432 = vadd.f32 %v424, %v430
  %433 = vst [vmem:[%s3] sm:$0xff] %v432
  // Predicated region
  $region14: #{qgnn_forward.1} parent=0 // pred_check
    _
  $region15: #{qgnn_forward.1} parent=0 // pred_check_branch
    %435 = sbr.rel (0) target = $region17
  $region16: #{qgnn_forward.1} parent=0 // pred_region
    _
  $region17: #{qgnn_forward.1} parent=0 // pred_fallthru
    _
  // Predicated region
  $region18: #{qgnn_forward.1} parent=0 // pred_check
    _
  $region19: #{qgnn_forward.1} parent=0 // pred_check_branch
    %437 = sbr.rel (0) target = $region21
  $region20: #{qgnn_forward.1} parent=0 // pred_region
    _
  $region21: #{qgnn_forward.1} parent=0 // pred_fallthru
    _

</llo_original>
